<compile_context>
chip_gen: v6e
topology: v6e:2x2x1
jax: 0.10.0
libtpu: 0.0.40
codegen_flags: <defaults>
</compile_context>

<pallas_src>
import functools

import jax
import jax.numpy as jnp
from jax.experimental import pallas as pl
from jax.experimental.pallas import tpu as pltpu


# VMEM planning constants (shared across v5e / v6e / v7x).
_PLAN_VMEM_BUDGET = 40 * 1024 * 1024   # inputs (double-buffered) + f32 temps
_TARGET_TILE_BYTES = 3 * 1024 * 1024   # per input tile per pipeline buffer
_VMEM_LIMIT_BYTES = 48 * 1024 * 1024   # < v7x 64 MiB physical, > scoped defaults


def _round_up(x, m):
    return ((x + m - 1) // m) * m


def _kl_loss_kernel(pred_ref, label_ref, out_ref, *, batch, tile_rows):
    pred = pred_ref[...].astype(jnp.float32)
    label = label_ref[...].astype(jnp.float32)

    # log_softmax(prediction) pieces: only the row log-normalizer is needed.
    pmax = jnp.max(pred, axis=1, keepdims=True)
    pshift = pred - pmax
    ps = jnp.sum(jnp.exp(pshift), axis=1, keepdims=True)

    # softmax(label) pieces (single exp shared by probs2 and log_probs2).
    lmax = jnp.max(label, axis=1, keepdims=True)
    lshift = label - lmax
    le = jnp.exp(lshift)
    ls = jnp.sum(le, axis=1, keepdims=True)

    # Per-row KL sum:
    #   sum_c probs2*(log_probs2 - log_probs1)
    #     = sum_c(le * d)/ls + log(ps) - log(ls),   d = lshift - pshift
    d = lshift - pshift
    num = jnp.sum(le * d, axis=1, keepdims=True)
    row_kl = num / ls + (jnp.log(ps) - jnp.log(ls))          # (TB, 1), per-row

    # Mask rows past the true batch size (ragged last tile holds padding).
    row0 = pl.program_id(0) * tile_rows
    rows = row0 + jax.lax.broadcasted_iota(jnp.int32, row_kl.shape, 0)
    row_kl = jnp.where(rows < batch, row_kl, 0.0)

    # Tiny cross-sublane reduce of TB row sums, then one unmasked lane-dense
    # (1, 128) store per tile.
    partial = jnp.sum(row_kl)
    out_ref[...] = jnp.full(out_ref.shape, partial, dtype=jnp.float32)


def _pick_tile_rows(B, C, itemsizes):
    """Batch-tile size: byte-targeted, VMEM-budgeted (inputs + f32 temps),
    sublane-aligned for the most-packed dtype, >=2 tiles when splittable."""
    min_item = min(itemsizes)
    sublane = max(8, 32 // min_item)          # 8 for f32, 16 for bf16, 32 for i8

    if B <= sublane:
        return B                              # full dim => no divisibility rule

    # Bytes per batch-row: double-buffered input tiles + ~4 live (TB,C) f32
    # temporaries created by the kernel body.
    input_bpr = 2 * sum(itemsizes) * C
    temp_bpr = 4 * 4 * C
    max_tb_vmem = max(sublane, _PLAN_VMEM_BUDGET // (input_bpr + temp_bpr))

    # Byte-sized target so per-grid-step overhead (~0.35us) amortizes and the
    # DMA stream reaches the HBM roofline, independent of C.
    target_tb = max(sublane, _TARGET_TILE_BYTES // (max(itemsizes) * C))

    tb = min(max_tb_vmem, target_tb)

    # Megacore: keep at least 2 grid tiles so both v7x TensorCores get work.
    if B >= 2 * sublane:
        tb = min(tb, _round_up(pl.cdiv(B, 2), sublane))

    tb = max(sublane, (tb // sublane) * sublane)
    tb = min(tb, _round_up(B, sublane))
    if tb >= B:                               # only possible when B < 2*sublane
        return B                              # full-dim block, always legal
    return tb


def kl_loss(prediction, label, mul=False):
    """Pallas implementation of KLLoss.forward for 2-D (B, C) logits."""
    assert prediction.shape == label.shape and prediction.ndim == 2
    B, C = prediction.shape
    itemsizes = (jnp.dtype(prediction.dtype).itemsize,
                 jnp.dtype(label.dtype).itemsize)

    TB = _pick_tile_rows(B, C, itemsizes)
    num_tiles = pl.cdiv(B, TB)

    kernel = functools.partial(_kl_loss_kernel, batch=B, tile_rows=TB)

    partials = pl.pallas_call(
        kernel,
        out_shape=jax.ShapeDtypeStruct((num_tiles, 128), jnp.float32),
        grid=(num_tiles,),
        in_specs=[
            pl.BlockSpec((TB, C), lambda i: (i, 0)),
            pl.BlockSpec((TB, C), lambda i: (i, 0)),
        ],
        out_specs=pl.BlockSpec((1, 128), lambda i: (i, 0)),
        compiler_params=pltpu.CompilerParams(
            dimension_semantics=("parallel",),
            vmem_limit_bytes=_VMEM_LIMIT_BYTES),
    )(prediction, label)

    # Tiny final reduction + the /(B*C) 'mean' divide in the wrapper.
    loss = jnp.sum(partials[:, 0]) / jnp.float32(B * C)
    if mul:
        loss = loss * jnp.float32(B)
    return loss


def _kl_loss_ref(prediction, label, mul=False):
    """Pure-JAX reference for correctness checking."""
    log_probs1 = jax.nn.log_softmax(prediction.astype(jnp.float32), axis=1)
    probs2 = jax.nn.softmax(label.astype(jnp.float32), axis=1)
    kl = probs2 * (jnp.log(probs2) - log_probs1)
    loss = jnp.mean(kl)
    if mul:
        loss = loss * prediction.shape[0]
    return loss


if __name__ == "__main__":
    key = jax.random.PRNGKey(0)
    k1, k2, k3, k4, k5, k6 = jax.random.split(key, 6)

    # Small aligned case, f32, single tile.
    B, C = 8, 128
    prediction = jax.random.normal(k1, (B, C), dtype=jnp.float32)
    label = jax.random.normal(k2, (B, C), dtype=jnp.float32)
    loss = jax.block_until_ready(kl_loss(prediction, label, mul=False))
    loss_mul = jax.block_until_ready(kl_loss(prediction, label, mul=True))
    ref = _kl_loss_ref(prediction, label, mul=False)
    ref_mul = _kl_loss_ref(prediction, label, mul=True)
    assert jnp.allclose(loss, ref, rtol=2e-5, atol=2e-6), (loss, ref)
    assert jnp.allclose(loss_mul, ref_mul, rtol=2e-5, atol=2e-6), (loss_mul, ref_mul)

    # Ragged batch + bf16 inputs (exercises the in-kernel f32 upcast and the
    # bf16 sublane alignment path).
    B2, C2 = 10, 256
    p2 = jax.random.normal(k3, (B2, C2), dtype=jnp.float32).astype(jnp.bfloat16)
    l2 = jax.random.normal(k4, (B2, C2), dtype=jnp.float32).astype(jnp.bfloat16)
    loss2 = jax.block_until_ready(kl_loss(p2, l2, mul=True))
    ref2 = _kl_loss_ref(p2, l2, mul=True)
    assert jnp.allclose(loss2, ref2, rtol=2e-5, atol=2e-6), (loss2, ref2)

    # Multi-tile case with a ragged last tile (exercises megacore split + the
    # per-row mask).
    B3, C3 = 40, 128
    p3 = jax.random.normal(k5, (B3, C3), dtype=jnp.float32)
    l3 = jax.random.normal(k6, (B3, C3), dtype=jnp.float32)
    loss3 = jax.block_until_ready(kl_loss(p3, l3, mul=False))
    ref3 = _kl_loss_ref(p3, l3, mul=False)
    assert jnp.allclose(loss3, ref3, rtol=2e-5, atol=2e-6), (loss3, ref3)

    print("KERNEL_OK")
</pallas_src>

<mosaic_0001>
module attributes {stable_mosaic.version = 11 : i64} {
  func.func @_kl_loss_kernel(%arg0: i32, %arg1: memref<8x128xf32, #tpu.memory_space<vmem>>, %arg2: memref<8x128xf32, #tpu.memory_space<vmem>>, %arg3: memref<1x128xf32, #tpu.memory_space<vmem>>) attributes {dimension_semantics = [#tpu.dimension_semantics<parallel>], iteration_bounds = array<i64: 1>, scalar_prefetch = 0 : i64, scratch_operands = 0 : i64, tpu.core_type = #tpu.core_type<tc>, window_params = [{transform_indices = @transform_0, window_bounds = array<i64: 8, 128>}, {transform_indices = @transform_1, window_bounds = array<i64: 8, 128>}, {transform_indices = @transform_2, window_bounds = array<i64: 1, 128>}]} {
    %c0 = arith.constant 0 : index
    %c0_0 = arith.constant 0 : index
    %0 = vector.load %arg1[%c0, %c0_0] : memref<8x128xf32, #tpu.memory_space<vmem>>, vector<8x128xf32>
    %c0_1 = arith.constant 0 : index
    %c0_2 = arith.constant 0 : index
    %1 = vector.load %arg2[%c0_1, %c0_2] : memref<8x128xf32, #tpu.memory_space<vmem>>, vector<8x128xf32>
    %cst = arith.constant dense<0xFF800000> : vector<8xf32>
    %2 = vector.multi_reduction <maximumf>, %0, %cst [1] : vector<8x128xf32> to vector<8xf32>
    %3 = vector.shape_cast %2 : vector<8xf32> to vector<8x1xf32>
    %4 = vector.broadcast %3 : vector<8x1xf32> to vector<8x128xf32>
    %5 = arith.subf %0, %4 : vector<8x128xf32>
    %6 = math.exp %5 : vector<8x128xf32>
    %cst_3 = arith.constant dense<0.000000e+00> : vector<8xf32>
    %7 = vector.multi_reduction <add>, %6, %cst_3 [1] : vector<8x128xf32> to vector<8xf32>
    %8 = vector.shape_cast %7 : vector<8xf32> to vector<8x1xf32>
    %cst_4 = arith.constant dense<0xFF800000> : vector<8xf32>
    %9 = vector.multi_reduction <maximumf>, %1, %cst_4 [1] : vector<8x128xf32> to vector<8xf32>
    %10 = vector.shape_cast %9 : vector<8xf32> to vector<8x1xf32>
    %11 = vector.broadcast %10 : vector<8x1xf32> to vector<8x128xf32>
    %12 = arith.subf %1, %11 : vector<8x128xf32>
    %13 = math.exp %12 : vector<8x128xf32>
    %cst_5 = arith.constant dense<0.000000e+00> : vector<8xf32>
    %14 = vector.multi_reduction <add>, %13, %cst_5 [1] : vector<8x128xf32> to vector<8xf32>
    %15 = vector.shape_cast %14 : vector<8xf32> to vector<8x1xf32>
    %16 = arith.subf %12, %5 : vector<8x128xf32>
    %17 = arith.mulf %13, %16 : vector<8x128xf32>
    %cst_6 = arith.constant dense<0.000000e+00> : vector<8xf32>
    %18 = vector.multi_reduction <add>, %17, %cst_6 [1] : vector<8x128xf32> to vector<8xf32>
    %19 = vector.shape_cast %18 : vector<8xf32> to vector<8x1xf32>
    %20 = arith.divf %19, %15 : vector<8x1xf32>
    %21 = math.log %8 : vector<8x1xf32>
    %22 = math.log %15 : vector<8x1xf32>
    %23 = arith.subf %21, %22 : vector<8x1xf32>
    %24 = arith.addf %20, %23 : vector<8x1xf32>
    %c8_i32 = arith.constant 8 : i32
    %25 = arith.muli %arg0, %c8_i32 : i32
    %26 = tpu.iota {dimensions = array<i32: 0>} : vector<8x1xi32>
    %27 = vector.broadcast %25 : i32 to vector<8x1xi32>
    %28 = arith.addi %27, %26 : vector<8x1xi32>
    %c8_i32_7 = arith.constant 8 : i32
    %29 = vector.broadcast %c8_i32_7 : i32 to vector<8x1xi32>
    %30 = arith.cmpi slt, %28, %29 : vector<8x1xi32>
    %cst_8 = arith.constant 0.000000e+00 : f32
    %31 = vector.broadcast %cst_8 : f32 to vector<8x1xf32>
    %32 = arith.select %30, %24, %31 : vector<8x1xi1>, vector<8x1xf32>
    %33 = vector.shape_cast %32 : vector<8x1xf32> to vector<1x8x1xf32>
    %cst_9 = arith.constant dense<0.000000e+00> : vector<1xf32>
    %34 = vector.multi_reduction <add>, %33, %cst_9 [1, 2] : vector<1x8x1xf32> to vector<1xf32>
    %35 = vector.shape_cast %34 : vector<1xf32> to vector<1x1x1xf32>
    %36 = vector.extract %35[0, 0, 0] : f32 from vector<1x1x1xf32>
    %37 = vector.broadcast %36 : f32 to vector<1x128xf32>
    %c0_10 = arith.constant 0 : index
    %c0_11 = arith.constant 0 : index
    %38 = vector.load %arg3[%c0_10, %c0_11] : memref<1x128xf32, #tpu.memory_space<vmem>>, vector<1x128xf32>
    tpu.vector_store %arg3[%c0_10, %c0_11], %37 {strides = array<i32>} : memref<1x128xf32, #tpu.memory_space<vmem>>, vector<1x128xf32>,
    return
  }
  func.func @transform_0(%arg0: i32) -> (i32, i32) {
    %c0_i32 = arith.constant 0 : i32
    %c0_i32_0 = arith.constant 0 : i32
    return %arg0, %c0_i32 : i32, i32
  }
  func.func @transform_1(%arg0: i32) -> (i32, i32) {
    %c0_i32 = arith.constant 0 : i32
    %c0_i32_0 = arith.constant 0 : i32
    return %arg0, %c0_i32 : i32, i32
  }
  func.func @transform_2(%arg0: i32) -> (i32, i32) {
    %c0_i32 = arith.constant 0 : i32
    %c0_i32_0 = arith.constant 0 : i32
    return %arg0, %c0_i32 : i32, i32
  }
}

</mosaic_0001>

<llo_original>
// kernel: tpu_custom_call.1
$region0: #{tpu_custom_call.1}
  #allocation0 [shape = 'u32[]', space=smem, size = 0x4, offset = 0x4, fixed_abs, tag = 'smem constant byte address 0x4 - core index']
  #allocation1 [shape = 'u32[144,128]{1,0:T(1,128)}', space=vmem, size = 0x12000, scoped, tag = 'internal scratch']
  %s0 = inlined_call_operand.hbm [shape: f32[8,128], index: 0, kind: input, shape index: {}]
  %s1 = inlined_call_operand.hbm [shape: f32[8,128], index: 1, kind: input, shape index: {}]
  %s2 = inlined_call_operand.hbm [shape: f32[1,128], index: 2, kind: output, shape index: {}]
  %s3 = sld [smem:[#allocation0]]
  $region26: #{tpu_custom_call.1} parent=0
    _
  %s5 = ssub.s32 1, %s3
  %s6 = scalar_select 0, %s5, %s3
  $region1: #{tpu_custom_call.1} parent=0
    #allocation2 [shape = 'u8[4096]{0}', space=vmem, size = 0x1000, scoped, tag = 'input window, operand 0, single buffered']
    #allocation3 [shape = 's32[1]{0}', space=sflag, size = 0x4, scoped, tag = 'scoped memory for tpu_custom_call.1']
    #allocation4 [shape = 's32[1]{0}', space=sflag, size = 0x4, scoped, tag = 'scoped memory for tpu_custom_call.1']
    #allocation5 [shape = 'u8[4096]{0}', space=vmem, size = 0x1000, scoped, tag = 'input window, operand 1, single buffered']
    #allocation6 [shape = 's32[1]{0}', space=sflag, size = 0x4, scoped, tag = 'scoped memory for tpu_custom_call.1']
    #allocation7 [shape = 'u8[512]{0}', space=vmem, size = 0x400, scoped, tag = 'output window, operand 0, single buffered']
    %7 = vsyncpa [#allocation3], 0
    %8 = vsyncpa [#allocation6], 0
    %9 = vsyncpa [#allocation4], 0
    // Predicated region
    $region2: #{tpu_custom_call.1} parent=1 // pred_check
      _
    $region3: #{tpu_custom_call.1} parent=1 // pred_check_branch
      %11 = sbr.rel (0) target = $region5
    $region4: #{tpu_custom_call.1} parent=1 // pred_region
      %s13 = ssub.s32 128, 128
      %14 = vsyncadd [#allocation3], %s13
      %s16 = sshll.u32 [#allocation2], 4
      %s17 = int_to_ptr.vmem [resolvable:$true] %s16
      %19 = dma.hbm_to_vmem [thread:$0]  %s0, 128, %s17, [#allocation3]
    $region5: #{tpu_custom_call.1} parent=1 // pred_fallthru
      _
    // Predicated region
    $region6: #{tpu_custom_call.1} parent=1 // pred_check
      _
    $region7: #{tpu_custom_call.1} parent=1 // pred_check_branch
      %21 = sbr.rel (0) target = $region9
    $region8: #{tpu_custom_call.1} parent=1 // pred_region
      %s23 = ssub.s32 128, 128
      %24 = vsyncadd [#allocation6], %s23
      %s26 = sshll.u32 [#allocation5], 4
      %s27 = int_to_ptr.vmem [resolvable:$true] %s26
      %29 = dma.hbm_to_vmem [thread:$0]  %s1, 128, %s27, [#allocation6]
    $region9: #{tpu_custom_call.1} parent=1 // pred_fallthru
      _
    // Predicated region
    $region10: #{tpu_custom_call.1} parent=1 // pred_check
      _
    $region11: #{tpu_custom_call.1} parent=1 // pred_check_branch
      %31 = sbr.rel (0) target = $region13
    $region12: #{tpu_custom_call.1} parent=1 // pred_region
      %32 = dma.done [#allocation3], 128
    $region13: #{tpu_custom_call.1} parent=1 // pred_fallthru
      _
    // Predicated region
    $region14: #{tpu_custom_call.1} parent=1 // pred_check
      _
    $region15: #{tpu_custom_call.1} parent=1 // pred_check_branch
      %34 = sbr.rel (0) target = $region17
    $region16: #{tpu_custom_call.1} parent=1 // pred_region
      %35 = dma.done [#allocation6], 128
    $region17: #{tpu_custom_call.1} parent=1 // pred_fallthru
      _
    %v36 = vld [vmem:[#allocation2] sm:$0xff]
    %v37 = vld [vmem:[#allocation5] sm:$0xff]
    %38 = vmax.xlane.f32.xlu0 %v36
    %v39 = vpop.xlane.xlu0 %38
    %v40 = vsub.f32 %v36, %v39
    %v41 = vmul.f32 %v40, 1.442695
    %v42 = vpow.pop %v41
    %43 = vadd.xlane.f32.xlu0 %v42
    %v44 = vpop.xlane.xlu0 %43
    %45 = vmax.xlane.f32.xlu0 %v37
    %v46 = vpop.xlane.xlu0 %45
    %v47 = vsub.f32 %v37, %v46
    %v48 = vmul.f32 %v47, 1.442695
    %v49 = vpow.pop %v48
    %50 = vadd.xlane.f32.xlu0 %v49
    %v51 = vpop.xlane.xlu0 %50
    %v52 = vsub.f32 %v47, %v40
    %v53 = vmul.f32 %v49, %v52
    %54 = vadd.xlane.f32.xlu0 %v53
    %v55 = vpop.xlane.xlu0 %54
    %v56 = vrcp.pop %v51
    %v57 = vmul.f32 %v55, %v56
    %v58 = vlog2.pop %v44
    %v59 = vmul.f32 %v58, 0.6931472
    %v60 = vlog2.pop %v51
    %v61 = vmul.f32 %v60, 0.6931472
    %v62 = vsub.f32 %v59, %v61
    %v63 = vadd.f32 %v57, %v62
    %s64 = smul.u32 0, 8
    %v65 = vlaneseq
    %v66 = vshrl.u32 %v65, 7
    %v67 = vstv %s64
    %v68 = vadd.s32 %v67, %v66
    %vm69 = vcmp.lt.s32.totalorder %v68, 8
    %v70 = vsel %vm69, %v63, 0.0
    %vm71 = vcmask 7168
    %v72 = vsel %vm71, %v70, 0.0
    %73 = vadd.xlane.f32.xlu0 %v72
    %v74 = vpop.xlane.xlu0 %73
    %v75 = vrot.slane %v74, 4
    %v76 = vadd.f32 %v74, %v75
    %v77 = vrot.slane %v76, 2
    %v78 = vadd.f32 %v76, %v77
    %v79 = vrot.slane %v78, 1
    %v80 = vadd.f32 %v78, %v79
    %s81 = vtos %v80
    %v82 = vstv %s81
    %83 = vst [vmem:[#allocation7] sm:$0x1] %v82
    // Predicated region
    $region18: #{tpu_custom_call.1} parent=1 // pred_check
      _
    $region19: #{tpu_custom_call.1} parent=1 // pred_check_branch
      %85 = sbr.rel (0) target = $region21
    $region20: #{tpu_custom_call.1} parent=1 // pred_region
      %s87 = ssub.s32 16, 16
      %88 = vsyncadd [#allocation4], %s87
      %s90 = sshll.u32 [#allocation7], 4
      %s91 = int_to_ptr.vmem [resolvable:$true] %s90
      %93 = dma.vmem_to_hbm [thread:$0]  %s91, 16, %s2, [#allocation4]
    $region21: #{tpu_custom_call.1} parent=1 // pred_fallthru
      _
    // Predicated region
    $region22: #{tpu_custom_call.1} parent=1 // pred_check
      _
    $region23: #{tpu_custom_call.1} parent=1 // pred_check_branch
      %95 = sbr.rel (0) target = $region25
    $region24: #{tpu_custom_call.1} parent=1 // pred_region
      %96 = dma.done [#allocation4], 16
    $region25: #{tpu_custom_call.1} parent=1 // pred_fallthru
      _
    %97 = vsyncpa [#allocation3], 1
    %98 = vsyncpa [#allocation6], 1
    %99 = vsyncpa [#allocation4], 1

</llo_original>
